<compile_context>
chip_gen: v7x
topology: tpu7x:2x2x1
jax: 0.10.0
libtpu: 0.0.40
codegen_flags: <defaults>
</compile_context>

<pallas_src>
import numpy as np
import jax
import jax.numpy as jnp
from jax import lax
from jax.experimental import pallas as pl
from jax.experimental.pallas import tpu as pltpu

LANES = 128


def _round_up(n: int, m: int) -> int:
    return ((n + m - 1) // m) * m


def _cdiv(a: int, b: int) -> int:
    return (a + b - 1) // b


def _deformator_ref(x, weight, bias, shift_dim):
    """Plain-XLA forward: reference + tiny-batch / non-packable fallback."""
    input_dim = weight.shape[1]
    x2d = x.reshape((-1, input_dim)).astype(jnp.float32)
    out = x2d @ weight.T.astype(jnp.float32) + bias.astype(jnp.float32)
    in_norm = jnp.sqrt(jnp.sum(x2d * x2d, axis=1, keepdims=True))
    out_norm = jnp.sqrt(jnp.sum(out * out, axis=1, keepdims=True))
    out = in_norm / out_norm * out
    return out.astype(x.dtype).reshape((-1, shift_dim))


def _deformator_kernel(x_ref, w_ref, b_ref, seg_ref, o_ref):
    # x_ref  : [TBP, 128]  packed input (P logical rows per physical row)  (streams)
    # w_ref  : [128, 128]  block-diagonal replication of W^T               (resident)
    # b_ref  : [1, 128]    bias tiled P times, f32                         (resident)
    # seg_ref: [128, 128]  block-diagonal ones -> segmented sum+broadcast  (resident)
    x = x_ref[...]
    w = w_ref[...]
    seg = seg_ref[...]
    b = b_ref[...].astype(jnp.float32)

    # nn.Linear per 32-lane group: x @ W^T + b, f32 MXU accumulate.
    out = jnp.dot(x, w, preferred_element_type=jnp.float32) + b

    # Per-logical-row squared norms as segmented sums on the MXU: one vmatmul sums
    # each 32-lane group and broadcasts the result back across the group, so the
    # scale below is already lane-aligned (no reshape / cross-lane reduce).
    x32 = x.astype(jnp.float32)
    in_sq = jnp.dot(x32 * x32, seg, preferred_element_type=jnp.float32)
    out_sq = jnp.dot(out * out, seg, preferred_element_type=jnp.float32)

    # ||x|| / ||out|| as sqrt * rsqrt (EUP slot, no VPU divide).
    # NB: ||out|| == 0 -> inf/NaN, matching PyTorch's division-by-zero behavior.
    scale = jnp.sqrt(in_sq) * lax.rsqrt(out_sq)
    o_ref[...] = (scale * out).astype(o_ref.dtype)


def latent_deformator_forward(x, weight, bias, shift_dim, *,
                              tile_rows=16384, use_pallas=None):
    """LatentDeformator forward.

    x      : any shape whose numel is a multiple of input_dim
    weight : [out_dim, input_dim]   (PyTorch nn.Linear layout)
    bias   : [out_dim]
    """
    out_dim, input_dim = weight.shape
    x2d = x.reshape((-1, input_dim))
    batch = x2d.shape[0]

    packable = (input_dim == out_dim) and (LANES % input_dim == 0)
    if use_pallas is None:
        # Tiny batches are pure launch/DMA-setup overhead in a kernel -> plain XLA.
        use_pallas = batch * input_dim >= 8192
    if not (use_pallas and packable):
        # TODO(synk): Pallas path for input_dim != out_dim or dims not dividing 128
        # (would need separate pack factors for x and out); plain XLA used instead.
        return _deformator_ref(x, weight, bias, shift_dim)

    pack = LANES // input_dim                 # logical rows per 128-lane physical row
    dtype = x2d.dtype
    itemsize = jnp.dtype(dtype).itemsize
    sub = max(8, 32 // itemsize)              # sublane multiple for this dtype

    # ---- Constant operands: built once, kept resident in VMEM across the grid ----
    eye = jnp.eye(pack, dtype=jnp.float32)
    w_bd = jnp.kron(eye, weight.T.astype(jnp.float32)).astype(dtype)          # [128,128]
    seg = jnp.kron(eye, jnp.ones((input_dim, input_dim), jnp.float32)).astype(dtype)
    b_tiled = jnp.tile(bias.reshape(1, out_dim).astype(jnp.float32), (1, pack))  # [1,128]

    # ---- Pack `pack` logical rows per physical row (contiguous, free reshape) ----
    batch4 = _round_up(batch, pack)
    if batch4 != batch:
        # Padded rows are zeros: scale = sqrt(0) * rsqrt(||b||^2) = 0 (NaN only if
        # bias == 0); either way they are sliced off below.
        x2d = jnp.pad(x2d, ((0, batch4 - batch), (0, 0)))
    packed_batch = batch4 // pack
    x_pack = x2d.reshape((packed_batch, LANES))

    # ---- Batch tile: as large as sensible, but keep >= 4 grid steps so the
    #      "parallel" axis can shard across v7x's two TensorCores. ----------------
    tbp_max = max(sub, _round_up(max(tile_rows // pack, sub), sub))
    steps = max(4, _cdiv(packed_batch, tbp_max))
    tbp = max(sub, min(tbp_max, _round_up(_cdiv(packed_batch, steps), sub)))
    padded_packed = _round_up(packed_batch, tbp)
    if padded_packed != packed_batch:
        x_pack = jnp.pad(x_pack, ((0, padded_packed - packed_batch), (0, 0)))
    grid = (padded_packed // tbp,)

    # ---- VMEM budget: double-buffered x/out tiles + resident constants + slack ---
    tile_bytes = tbp * LANES * itemsize
    const_bytes = 2 * LANES * LANES * itemsize + LANES * 4
    vmem_limit = max(int(4 * tile_bytes + 2 * const_bytes + (4 << 20)), 32 << 20)

    cost = pl.CostEstimate(
        flops=int(6 * padded_packed * LANES * LANES + 8 * padded_packed * LANES),
        transcendentals=int(2 * padded_packed * LANES),
        bytes_accessed=int(2 * padded_packed * LANES * itemsize + const_bytes),
    )

    out_pack = pl.pallas_call(
        _deformator_kernel,
        out_shape=jax.ShapeDtypeStruct((padded_packed, LANES), dtype),
        grid=grid,
        in_specs=[
            pl.BlockSpec((tbp, LANES), lambda i: (i, 0)),       # x: streams
            pl.BlockSpec((LANES, LANES), lambda i: (0, 0)),     # W block-diag: resident
            pl.BlockSpec((1, LANES), lambda i: (0, 0)),         # bias tiled: resident
            pl.BlockSpec((LANES, LANES), lambda i: (0, 0)),     # seg ones: resident
        ],
        out_specs=pl.BlockSpec((tbp, LANES), lambda i: (i, 0)),
        compiler_params=pltpu.CompilerParams(
            dimension_semantics=("parallel",),
            vmem_limit_bytes=vmem_limit,
        ),
        cost_estimate=cost,
    )(x_pack, w_bd, b_tiled, seg)

    out = out_pack[:packed_batch].reshape((batch4, out_dim))
    if batch4 != batch:
        out = out[:batch]
    return out.reshape((-1, shift_dim))


if __name__ == "__main__":
    # Module config: shift_dim = 32 -> input_dim = out_dim = 32
    shift_dim = 32
    input_dim = shift_dim
    out_dim = shift_dim

    key = jax.random.PRNGKey(0)
    k_w, k_b, k_x, k_t = jax.random.split(key, 4)

    # Deterministic "random_init=True"-style init:
    #   weight = 0.1 * randn([out_dim, input_dim])
    #   bias   = uniform(-1/sqrt(input_dim), 1/sqrt(input_dim))  (nn.Linear default)
    weight = 0.1 * jax.random.normal(k_w, (out_dim, input_dim), dtype=jnp.float32)
    bound = 1.0 / np.sqrt(input_dim)
    bias = jax.random.uniform(k_b, (out_dim,), dtype=jnp.float32,
                              minval=-bound, maxval=bound)

    # Small-but-kernel-exercising input: [2, 4, 16, 32] flattens to 128 rows of 32.
    x = jax.random.normal(k_x, (2, 4, 16, 32), dtype=jnp.float32)

    out = latent_deformator_forward(x, weight, bias, shift_dim, use_pallas=True)
    out = jax.block_until_ready(out)
    ref = _deformator_ref(x, weight, bias, shift_dim)
    np.testing.assert_allclose(np.asarray(out), np.asarray(ref),
                               rtol=1e-4, atol=1e-5)

    # Tiny batch ([2, 4, 32] -> 8 rows) takes the auto XLA fallback path.
    x_tiny = jax.random.normal(k_t, (2, 4, 32), dtype=jnp.float32)
    out_tiny = jax.block_until_ready(
        latent_deformator_forward(x_tiny, weight, bias, shift_dim))
    np.testing.assert_allclose(np.asarray(out_tiny),
                               np.asarray(_deformator_ref(x_tiny, weight, bias, shift_dim)),
                               rtol=1e-4, atol=1e-5)

    print("KERNEL_OK")
</pallas_src>

<mosaic_0001>
module attributes {stable_mosaic.version = 11 : i64} {
  func.func @_deformator_kernel(%arg0: i32, %arg1: memref<8x128xf32, #tpu.memory_space<vmem>>, %arg2: memref<128x128xf32, #tpu.memory_space<vmem>>, %arg3: memref<1x128xf32, #tpu.memory_space<vmem>>, %arg4: memref<128x128xf32, #tpu.memory_space<vmem>>, %arg5: memref<8x128xf32, #tpu.memory_space<vmem>>) attributes {dimension_semantics = [#tpu.dimension_semantics<parallel>], iteration_bounds = array<i64: 4>, scalar_prefetch = 0 : i64, scratch_operands = 0 : i64, tpu.core_type = #tpu.core_type<tc>, window_params = [{transform_indices = @transform_0, window_bounds = array<i64: 8, 128>}, {pipeline_mode = #tpu.pipeline_mode<synchronous>, transform_indices = @transform_1, window_bounds = array<i64: 128, 128>}, {pipeline_mode = #tpu.pipeline_mode<synchronous>, transform_indices = @transform_2, window_bounds = array<i64: 1, 128>}, {pipeline_mode = #tpu.pipeline_mode<synchronous>, transform_indices = @transform_3, window_bounds = array<i64: 128, 128>}, {transform_indices = @transform_4, window_bounds = array<i64: 8, 128>}]} {
    %c0 = arith.constant 0 : index
    %c0_0 = arith.constant 0 : index
    %0 = vector.load %arg1[%c0, %c0_0] : memref<8x128xf32, #tpu.memory_space<vmem>>, vector<8x128xf32>
    %c0_1 = arith.constant 0 : index
    %c0_2 = arith.constant 0 : index
    %1 = vector.load %arg2[%c0_1, %c0_2] : memref<128x128xf32, #tpu.memory_space<vmem>>, vector<128x128xf32>
    %c0_3 = arith.constant 0 : index
    %c0_4 = arith.constant 0 : index
    %2 = vector.load %arg4[%c0_3, %c0_4] : memref<128x128xf32, #tpu.memory_space<vmem>>, vector<128x128xf32>
    %c0_5 = arith.constant 0 : index
    %c0_6 = arith.constant 0 : index
    %3 = vector.load %arg3[%c0_5, %c0_6] : memref<1x128xf32, #tpu.memory_space<vmem>>, vector<1x128xf32>
    %cst = arith.constant dense<0.000000e+00> : vector<8x128xf32>
    %4 = tpu.matmul %0, %1, %cst {dimension_numbers = #tpu.dot_dimension_numbers<[1], [0], [0], [1], [0, 0, 1, 1], [], []>} : vector<8x128xf32>, vector<128x128xf32>, vector<8x128xf32> -> vector<8x128xf32>
    %5 = vector.broadcast %3 : vector<1x128xf32> to vector<8x128xf32>
    %6 = arith.addf %4, %5 : vector<8x128xf32>
    %7 = arith.mulf %0, %0 : vector<8x128xf32>
    %cst_7 = arith.constant dense<0.000000e+00> : vector<8x128xf32>
    %8 = tpu.matmul %7, %2, %cst_7 {dimension_numbers = #tpu.dot_dimension_numbers<[1], [0], [0], [1], [0, 0, 1, 1], [], []>} : vector<8x128xf32>, vector<128x128xf32>, vector<8x128xf32> -> vector<8x128xf32>
    %9 = arith.mulf %6, %6 : vector<8x128xf32>
    %cst_8 = arith.constant dense<0.000000e+00> : vector<8x128xf32>
    %10 = tpu.matmul %9, %2, %cst_8 {dimension_numbers = #tpu.dot_dimension_numbers<[1], [0], [0], [1], [0, 0, 1, 1], [], []>} : vector<8x128xf32>, vector<128x128xf32>, vector<8x128xf32> -> vector<8x128xf32>
    %11 = math.sqrt %8 : vector<8x128xf32>
    %12 = math.rsqrt %10 : vector<8x128xf32>
    %13 = arith.mulf %11, %12 : vector<8x128xf32>
    %14 = arith.mulf %13, %6 : vector<8x128xf32>
    %c0_9 = arith.constant 0 : index
    %c0_10 = arith.constant 0 : index
    %15 = vector.load %arg5[%c0_9, %c0_10] : memref<8x128xf32, #tpu.memory_space<vmem>>, vector<8x128xf32>
    tpu.vector_store %arg5[%c0_9, %c0_10], %14 {strides = array<i32>} : memref<8x128xf32, #tpu.memory_space<vmem>>, vector<8x128xf32>,
    return
  }
  func.func @transform_0(%arg0: i32) -> (i32, i32) {
    %c0_i32 = arith.constant 0 : i32
    %c0_i32_0 = arith.constant 0 : i32
    return %arg0, %c0_i32 : i32, i32
  }
  func.func @transform_1(%arg0: i32) -> (i32, i32) {
    %c0_i32 = arith.constant 0 : i32
    %c0_i32_0 = arith.constant 0 : i32
    %c0_i32_1 = arith.constant 0 : i32
    return %c0_i32, %c0_i32_0 : i32, i32
  }
  func.func @transform_2(%arg0: i32) -> (i32, i32) {
    %c0_i32 = arith.constant 0 : i32
    %c0_i32_0 = arith.constant 0 : i32
    %c0_i32_1 = arith.constant 0 : i32
    return %c0_i32, %c0_i32_0 : i32, i32
  }
  func.func @transform_3(%arg0: i32) -> (i32, i32) {
    %c0_i32 = arith.constant 0 : i32
    %c0_i32_0 = arith.constant 0 : i32
    %c0_i32_1 = arith.constant 0 : i32
    return %c0_i32, %c0_i32_0 : i32, i32
  }
  func.func @transform_4(%arg0: i32) -> (i32, i32) {
    %c0_i32 = arith.constant 0 : i32
    %c0_i32_0 = arith.constant 0 : i32
    return %arg0, %c0_i32 : i32, i32
  }
}

</mosaic_0001>

<llo_original>
// kernel: tpu_custom_call.1
$region0: #{tpu_custom_call.1}
  #allocation0 [shape = 'u32[]', space=smem, size = 0x4, offset = 0x4, fixed_abs, tag = 'smem constant byte address 0x4 - core index']
  #allocation1 [shape = 'u32[144,128]{1,0:T(1,128)}', space=vmem, size = 0x12000, scoped, tag = 'internal scratch']
  %s0 = inlined_call_operand.hbm [shape: f32[32,128], index: 0, kind: input, shape index: {}]
  %s1 = inlined_call_operand.hbm [shape: f32[128,128], index: 1, kind: input, shape index: {}]
  %s2 = inlined_call_operand.vmem [shape: f32[1,128], index: 2, kind: input, shape index: {}]
  %s3 = inlined_call_operand.hbm [shape: f32[128,128], index: 3, kind: input, shape index: {}]
  %s4 = inlined_call_operand.hbm [shape: f32[32,128], index: 4, kind: output, shape index: {}]
  %s5 = sld [smem:[#allocation0]]
  $region61: #{tpu_custom_call.1} parent=0
    _
  %s7 = ssub.s32 1, %s5
  %s8 = scalar_select 0, %s7, %s5
  $region1: #{tpu_custom_call.1} parent=0
    #allocation2 [shape = 'u8[8192]{0}', space=vmem, size = 0x2000, scoped, tag = 'input window, operand 0']
    #allocation3 [shape = 's32[2]{0}', space=sflag, size = 0x8, scoped, tag = 'scoped memory for tpu_custom_call.1']
    #allocation4 [shape = 's32[2]{0}', space=sflag, size = 0x8, scoped, tag = 'scoped memory for tpu_custom_call.1']
    #allocation5 [shape = 'u8[65536]{0}', space=vmem, size = 0x10000, scoped, tag = 'input window, operand 1, single buffered']
    #allocation6 [shape = 's32[1]{0}', space=sflag, size = 0x4, scoped, tag = 'scoped memory for tpu_custom_call.1']
    #allocation7 [shape = 'u8[65536]{0}', space=vmem, size = 0x10000, scoped, tag = 'input window, operand 3, single buffered']
    #allocation8 [shape = 'u8[8192]{0}', space=vmem, size = 0x2000, scoped, tag = 'output window, operand 0']
    %9 = vsyncpa [#allocation3], 0
    %s10 = scalar_lea.sflag [#allocation3], 1
    %11 = vsyncpa %s10, 0
    %12 = vsyncpa [#allocation6], 0
    %13 = vsyncpa [#allocation4], 0
    %s14 = scalar_lea.sflag [#allocation4], 1
    %15 = vsyncpa %s14, 0
    loop: start=0, step=1, limit=6
    $region2: #{tpu_custom_call.1} parent=1 // loop_pre_header
      _
    $region3: #{tpu_custom_call.1} parent=1 // loop_header
      %s17 = sphi 0, %s21
      %p18 = scmp.ge.s32.totalorder %s17, 6
      %s27 = sphi 0, %s29
      %s30 = sphi 0, %s27
      %s31 = sphi 0, %s30
      %s47 = sphi 0, %s31
      %s51 = sphi 0, %s51
      %s53 = sphi 0, %s51
      %s54 = sphi 0, %s53
      %s68 = sphi 0, %s54
      %s72 = sphi 0, %s72
      %s74 = sphi 0, %s72
      %s75 = sphi 0, %s74
      %s89 = sphi 0, %s75
      %s93 = sphi 0, %s93
      %s95 = sphi 0, %s93
      %s96 = sphi 0, %s95
      %s110 = sphi 0, %s96
      %s116 = sphi 0, %s118
      %s119 = sphi 0, %s116
      %s120 = sphi 0, %s119
      %s136 = sphi 0, %s120
    $region4: #{tpu_custom_call.1} parent=1 // loop_header_branch
      %20 = sbr.rel (%p18) target = $region8
    $region5: #{tpu_custom_call.1} parent=1 // loop_body
      %s22 = ssub.s32 %s17, 1
      %s23 = ssub.s32 %s17, 2
      %s24 = sadd.s32 %s17, 1
      %s25 = ssub.s32 %s17, %s24
      %p26 = scmp.eq.s32.totalorder %s25, 0
      %s28 = sadd.s32 %s27, 1
      %s29 = scalar_select %p26, %s27, %s28
      %p32 = pneg %p26
      %p33 = scmp.eq.s32.totalorder %s17, 3
      %p34 = por %p32, %p33
      %p35 = scmp.ne.s32.totalorder %s27, %s30
      %p36 = scmp.eq.s32.totalorder %s17, 0
      %p37 = por %p35, %p36
      %p38 = scmp.ne.s32.totalorder %s27, %s30
      %p39 = scmp.eq.s32.totalorder %s22, 3
      %p40 = por %p38, %p39
      %p41 = scmp.ne.s32.totalorder %s30, %s31
      %p42 = scmp.eq.s32.totalorder %s22, 0
      %p43 = por %p41, %p42
      %p44 = scmp.ne.s32.totalorder %s30, %s31
      %p45 = scmp.eq.s32.totalorder %s23, 3
      %p46 = por %p44, %p45
      %p48 = scmp.ne.s32.totalorder %s31, %s47
      %p49 = scmp.eq.s32.totalorder %s23, 0
      %p50 = por %p48, %p49
      %s52 = sadd.s32 %s51, 1
      %p55 = scmp.eq.s32.totalorder %s17, 3
      %p56 = scmp.ne.s32.totalorder %s51, %s53
      %p57 = scmp.eq.s32.totalorder %s17, 0
      %p58 = por %p56, %p57
      %p59 = scmp.ne.s32.totalorder %s51, %s53
      %p60 = scmp.eq.s32.totalorder %s22, 3
      %p61 = por %p59, %p60
      %p62 = scmp.ne.s32.totalorder %s53, %s54
      %p63 = scmp.eq.s32.totalorder %s22, 0
      %p64 = por %p62, %p63
      %p65 = scmp.ne.s32.totalorder %s53, %s54
      %p66 = scmp.eq.s32.totalorder %s23, 3
      %p67 = por %p65, %p66
      %p69 = scmp.ne.s32.totalorder %s54, %s68
      %p70 = scmp.eq.s32.totalorder %s23, 0
      %p71 = por %p69, %p70
      %s73 = sadd.s32 %s72, 1
      %p76 = scmp.eq.s32.totalorder %s17, 3
      %p77 = scmp.ne.s32.totalorder %s72, %s74
      %p78 = scmp.eq.s32.totalorder %s17, 0
      %p79 = por %p77, %p78
      %p80 = scmp.ne.s32.totalorder %s72, %s74
      %p81 = scmp.eq.s32.totalorder %s22, 3
      %p82 = por %p80, %p81
      %p83 = scmp.ne.s32.totalorder %s74, %s75
      %p84 = scmp.eq.s32.totalorder %s22, 0
      %p85 = por %p83, %p84
      %p86 = scmp.ne.s32.totalorder %s74, %s75
      %p87 = scmp.eq.s32.totalorder %s23, 3
      %p88 = por %p86, %p87
      %p90 = scmp.ne.s32.totalorder %s75, %s89
      %p91 = scmp.eq.s32.totalorder %s23, 0
      %p92 = por %p90, %p91
      %s94 = sadd.s32 %s93, 1
      %p97 = scmp.eq.s32.totalorder %s17, 3
      %p98 = scmp.ne.s32.totalorder %s93, %s95
      %p99 = scmp.eq.s32.totalorder %s17, 0
      %p100 = por %p98, %p99
      %p101 = scmp.ne.s32.totalorder %s93, %s95
      %p102 = scmp.eq.s32.totalorder %s22, 3
      %p103 = por %p101, %p102
      %p104 = scmp.ne.s32.totalorder %s95, %s96
      %p105 = scmp.eq.s32.totalorder %s22, 0
      %p106 = por %p104, %p105
      %p107 = scmp.ne.s32.totalorder %s95, %s96
      %p108 = scmp.eq.s32.totalorder %s23, 3
      %p109 = por %p107, %p108
      %p111 = scmp.ne.s32.totalorder %s96, %s110
      %p112 = scmp.eq.s32.totalorder %s23, 0
      %p113 = por %p111, %p112
      %s114 = ssub.s32 %s17, %s24
      %p115 = scmp.eq.s32.totalorder %s114, 0
      %s117 = sadd.s32 %s116, 1
      %s118 = scalar_select %p115, %s116, %s117
      %p121 = pneg %p115
      %p122 = scmp.eq.s32.totalorder %s17, 3
      %p123 = por %p121, %p122
      %p124 = scmp.ne.s32.totalorder %s116, %s119
      %p125 = scmp.eq.s32.totalorder %s17, 0
      %p126 = por %p124, %p125
      %p127 = scmp.ne.s32.totalorder %s116, %s119
      %p128 = scmp.eq.s32.totalorder %s22, 3
      %p129 = por %p127, %p128
      %p130 = scmp.ne.s32.totalorder %s119, %s120
      %p131 = scmp.eq.s32.totalorder %s22, 0
      %p132 = por %p130, %p131
      %p133 = scmp.ne.s32.totalorder %s119, %s120
      %p134 = scmp.eq.s32.totalorder %s23, 3
      %p135 = por %p133, %p134
      %p137 = scmp.ne.s32.totalorder %s120, %s136
      %p138 = scmp.eq.s32.totalorder %s23, 0
      %p139 = por %p137, %p138
      %p140 = scmp.le.s32.totalorder 1, %s17
      %p141 = scmp.lt.s32.totalorder %s17, 5
      %p142 = pnand %p140, %p141
      %p143 = pneg %p142
      // Predicated region
      $region9: #{tpu_custom_call.1} parent=5 // pred_check
        _
      $region10: #{tpu_custom_call.1} parent=5 // pred_check_branch
        %145 = sbr.rel (%p142) target = $region12
      $region11: #{tpu_custom_call.1} parent=5 // pred_region
        %s146 = ssub.s32 %s17, 1
        // Predicated region
        $region13: #{tpu_custom_call.1} parent=11 // pred_check
          %p147 = pneg %p64
        $region14: #{tpu_custom_call.1} parent=11 // pred_check_branch
          %149 = sbr.rel (%p147) target = $region16
        $region15: #{tpu_custom_call.1} parent=11 // pred_region
          %s151 = ssub.s32 2048, 2048
          %152 = vsyncadd [#allocation6], %s151
          %s153 = sshll.u32 [#allocation5], 4
          %s154 = int_to_ptr.vmem [resolvable:$true] %s153
          %159 = dma.hbm_to_vmem [thread:$0]  %s1, 2048, %s154, [#allocation6], 128, 128, 8
        $region16: #{tpu_custom_call.1} parent=11 // pred_fallthru
          _
        // Predicated region
        $region17: #{tpu_custom_call.1} parent=11 // pred_check
          %p160 = pneg %p85
        $region18: #{tpu_custom_call.1} parent=11 // pred_check_branch
          %162 = sbr.rel (%p160) target = $region20
        $region19: #{tpu_custom_call.1} parent=11 // pred_region
          _
        $region20: #{tpu_custom_call.1} parent=11 // pred_fallthru
          _
        // Predicated region
        $region21: #{tpu_custom_call.1} parent=11 // pred_check
          %p163 = pneg %p106
        $region22: #{tpu_custom_call.1} parent=11 // pred_check_branch
          %165 = sbr.rel (%p163) target = $region24
        $region23: #{tpu_custom_call.1} parent=11 // pred_region
          %s167 = ssub.s32 2048, 2048
          %168 = vsyncadd [#allocation6], %s167
          %s169 = sshll.u32 [#allocation7], 4
          %s170 = int_to_ptr.vmem [resolvable:$true] %s169
          %175 = dma.hbm_to_vmem [thread:$0]  %s3, 2048, %s170, [#allocation6], 128, 128, 8
        $region24: #{tpu_custom_call.1} parent=11 // pred_fallthru
          _
      $region12: #{tpu_custom_call.1} parent=5 // pred_fallthru
        _
      %p176 = scmp.lt.s32.totalorder %s17, 4
      // Predicated region
      $region25: #{tpu_custom_call.1} parent=5 // pred_check
        %p177 = pneg %p176
      $region26: #{tpu_custom_call.1} parent=5 // pred_check_branch
        %179 = sbr.rel (%p177) target = $region28
      $region27: #{tpu_custom_call.1} parent=5 // pred_region
        // Predicated region
        $region29: #{tpu_custom_call.1} parent=27 // pred_check
          %p180 = pneg %p37
        $region30: #{tpu_custom_call.1} parent=27 // pred_check_branch
          %182 = sbr.rel (%p180) target = $region32
        $region31: #{tpu_custom_call.1} parent=27 // pred_region
          %s183 = sand.u32 %s27, 1
          %s184 = scalar_lea.sflag [#allocation3], %s183
          %s185 = sand.u32 %s27, 1
          %s186 = smul.addr %s185, 8
          %s187 = scalar_lea.vmem [#allocation2], %s186
          %s189 = ssub.s32 128, 128
          %190 = vsyncadd %s184, %s189
          %s191 = smul.addr %s17, 128
          %s192 = scalar_lea.hbm %s0, %s191
          %s194 = sshll.u32 %s187, 4
          %s195 = int_to_ptr.vmem [resolvable:$true] %s194
          %197 = dma.hbm_to_vmem [thread:$0]  %s192, 128, %s195, %s184
        $region32: #{tpu_custom_call.1} parent=27 // pred_fallthru
          _
      $region28: #{tpu_custom_call.1} parent=5 // pred_fallthru
        _
      %p198 = scmp.le.s32.totalorder 1, %s17
      %p199 = scmp.lt.s32.totalorder %s17, 5
      %p200 = pnand %p198, %p199
      %p201 = pneg %p200
      // Predicated region
      $region33: #{tpu_custom_call.1} parent=5 // pred_check
        _
      $region34: #{tpu_custom_call.1} parent=5 // pred_check_branch
        %203 = sbr.rel (%p200) target = $region36
      $region35: #{tpu_custom_call.1} parent=5 // pred_region
        %s204 = ssub.s32 %s17, 1
        %s205 = sand.u32 %s30, 1
        %s206 = scalar_lea.sflag [#allocation3], %s205
        %s207 = sand.u32 %s30, 1
        %s208 = smul.addr %s207, 8
        %s209 = scalar_lea.vmem [#allocation2], %s208
        // Predicated region
        $region37: #{tpu_custom_call.1} parent=35 // pred_check
          %p210 = pneg %p43
        $region38: #{tpu_custom_call.1} parent=35 // pred_check_branch
          %212 = sbr.rel (%p210) target = $region40
        $region39: #{tpu_custom_call.1} parent=35 // pred_region
          %213 = dma.done %s206, 128
        $region40: #{tpu_custom_call.1} parent=35 // pred_fallthru
          _
        // Predicated region
        $region41: #{tpu_custom_call.1} parent=35 // pred_check
          %p214 = pneg %p64
        $region42: #{tpu_custom_call.1} parent=35 // pred_check_branch
          %216 = sbr.rel (%p214) target = $region44
        $region43: #{tpu_custom_call.1} parent=35 // pred_region
          %217 = dma.done [#allocation6], 2048
        $region44: #{tpu_custom_call.1} parent=35 // pred_fallthru
          _
        // Predicated region
        $region45: #{tpu_custom_call.1} parent=35 // pred_check
          %p218 = pneg %p106
        $region46: #{tpu_custom_call.1} parent=35 // pred_check_branch
          %220 = sbr.rel (%p218) target = $region48
        $region47: #{tpu_custom_call.1} parent=35 // pred_region
          %221 = dma.done [#allocation6], 2048
        $region48: #{tpu_custom_call.1} parent=35 // pred_fallthru
          _
        %s222 = sand.u32 %s30, 1
        %s223 = scalar_lea.sflag [#allocation3], %s222
        %s224 = sand.u32 %s30, 1
        %s225 = smul.addr %s224, 8
        %s226 = scalar_lea.vmem [#allocation2], %s225
        %p227 = pneg %p43
        %p228 = pneg %p40
        %p229 = pneg %p64
        %p230 = pneg %p61
        %p231 = pneg %p85
        %p232 = pneg %p82
        %p233 = pneg %p106
        %p234 = pneg %p103
        %p235 = pneg %p132
        %p236 = pneg %p129
        %s237 = sand.u32 %s119, 1
        %s238 = scalar_lea.sflag [#allocation4], %s237
        %s239 = sand.u32 %s119, 1
        %s240 = smul.addr %s239, 8
        %s241 = scalar_lea.vmem [#allocation8], %s240
        %v242 = vld [vmem:[%s209] sm:$0xff]
        %v243 = vld [vmem:[#allocation5] sm:$0xff]
        %v244 = vld [vmem:[#allocation5 + $0x8] sm:$0xff]
        %v245 = vld [vmem:[#allocation5 + $0x10] sm:$0xff]
        %v246 = vld [vmem:[#allocation5 + $0x18] sm:$0xff]
        %v247 = vld [vmem:[#allocation5 + $0x20] sm:$0xff]
        %v248 = vld [vmem:[#allocation5 + $0x28] sm:$0xff]
        %v249 = vld [vmem:[#allocation5 + $0x30] sm:$0xff]
        %v250 = vld [vmem:[#allocation5 + $0x38] sm:$0xff]
        %v251 = vld [vmem:[#allocation5 + $0x40] sm:$0xff]
        %v252 = vld [vmem:[#allocation5 + $0x48] sm:$0xff]
        %v253 = vld [vmem:[#allocation5 + $0x50] sm:$0xff]
        %v254 = vld [vmem:[#allocation5 + $0x58] sm:$0xff]
        %v255 = vld [vmem:[#allocation5 + $0x60] sm:$0xff]
        %v256 = vld [vmem:[#allocation5 + $0x68] sm:$0xff]
        %v257 = vld [vmem:[#allocation5 + $0x70] sm:$0xff]
        %v258 = vld [vmem:[#allocation5 + $0x78] sm:$0xff]
        %v259 = vld [vmem:[#allocation7] sm:$0xff]
        %v260 = vld [vmem:[#allocation7 + $0x8] sm:$0xff]
        %v261 = vld [vmem:[#allocation7 + $0x10] sm:$0xff]
        %v262 = vld [vmem:[#allocation7 + $0x18] sm:$0xff]
        %v263 = vld [vmem:[#allocation7 + $0x20] sm:$0xff]
        %v264 = vld [vmem:[#allocation7 + $0x28] sm:$0xff]
        %v265 = vld [vmem:[#allocation7 + $0x30] sm:$0xff]
        %v266 = vld [vmem:[#allocation7 + $0x38] sm:$0xff]
        %v267 = vld [vmem:[#allocation7 + $0x40] sm:$0xff]
        %v268 = vld [vmem:[#allocation7 + $0x48] sm:$0xff]
        %v269 = vld [vmem:[#allocation7 + $0x50] sm:$0xff]
        %v270 = vld [vmem:[#allocation7 + $0x58] sm:$0xff]
        %v271 = vld [vmem:[#allocation7 + $0x60] sm:$0xff]
        %v272 = vld [vmem:[#allocation7 + $0x68] sm:$0xff]
        %v273 = vld [vmem:[#allocation7 + $0x70] sm:$0xff]
        %v274 = vld [vmem:[#allocation7 + $0x78] sm:$0xff]
        %v275 = vld [vmem:[%s2] sm:$0x1]
        %v277 = vlaneseq
        %v278 = vshrl.u32 %v277, 7
        %v279 = vsub.s32 0, %v278
        %v280 = vrot.slane %v275, %v279
        %282 = vmatprep.subr.mxu0 0.0
        %283 = vmatpush1.msra.mxu0 %v243
        %284 = vmatprep.subr.mxu0 0.0
        %285 = vmatpush1.msra.mxu0 %v244
        %286 = vmatprep.subr.mxu0 0.0
        %287 = vmatpush1.msra.mxu0 %v245
        %288 = vmatprep.subr.mxu0 0.0
        %289 = vmatpush1.msra.mxu0 %v246
        %290 = vmatprep.subr.mxu0 0.0
        %291 = vmatpush1.msra.mxu0 %v247
        %292 = vmatprep.subr.mxu0 0.0
        %293 = vmatpush1.msra.mxu0 %v248
        %294 = vmatprep.subr.mxu0 0.0
        %295 = vmatpush1.msra.mxu0 %v249
        %296 = vmatprep.subr.mxu0 0.0
        %297 = vmatpush1.msra.mxu0 %v250
        %298 = vmatprep.subr.mxu0 0.0
        %299 = vmatpush1.msra.mxu0 %v251
        %300 = vmatprep.subr.mxu0 0.0
        %301 = vmatpush1.msra.mxu0 %v252
        %302 = vmatprep.subr.mxu0 0.0
        %303 = vmatpush1.msra.mxu0 %v253
        %304 = vmatprep.subr.mxu0 0.0
        %305 = vmatpush1.msra.mxu0 %v254
        %306 = vmatprep.subr.mxu0 0.0
        %307 = vmatpush1.msra.mxu0 %v255
        %308 = vmatprep.subr.mxu0 0.0
        %309 = vmatpush1.msra.mxu0 %v256
        %310 = vmatprep.subr.mxu0 0.0
        %311 = vmatpush1.msra.mxu0 %v257
        %312 = vmatprep.subr.mxu0 0.0
        %313 = vmatpush1.msra.mxu0 %v258
        %314 = vmatprep.subr.mxu0 0.0
        %315 = vmatpush1.msra.mxu0 0.0
        %316 = vmatprep.subr.mxu0 0.0
        %317 = vmatpush1.msra.mxu0 0.0
        %318 = vmatprep.subr.mxu0 0.0
        %319 = vmatpush1.msra.mxu0 0.0
        %320 = vmatprep.subr.mxu0 0.0
        %321 = vmatpush1.msra.mxu0 0.0
        %322 = vmatprep.subr.mxu0 0.0
        %323 = vmatpush1.msra.mxu0 0.0
        %324 = vmatprep.subr.mxu0 0.0
        %325 = vmatpush1.msra.mxu0 0.0
        %326 = vmatprep.subr.mxu0 0.0
        %327 = vmatpush1.msra.mxu0 0.0
        %328 = vmatprep.subr.mxu0 0.0
        %329 = vmatpush1.msra.mxu0 0.0
        %330 = vmatprep.subr.mxu0 0.0
        %331 = vmatpush1.msra.mxu0 0.0
        %332 = vmatprep.subr.mxu0 0.0
        %333 = vmatpush1.msra.mxu0 0.0
        %334 = vmatprep.subr.mxu0 0.0
        %335 = vmatpush1.msra.mxu0 0.0
        %336 = vmatprep.subr.mxu0 0.0
        %337 = vmatpush1.msra.mxu0 0.0
        %338 = vmatprep.subr.mxu0 0.0
        %339 = vmatpush1.msra.mxu0 0.0
        %340 = vmatprep.subr.mxu0 0.0
        %341 = vmatpush1.msra.mxu0 0.0
        %342 = vmatprep.subr.mxu0 0.0
        %343 = vmatpush1.msra.mxu0 0.0
        %344 = vmatprep.subr.mxu0 0.0
        %345 = vmatpush1.msra.mxu0 0.0
        %346 = vmatprep.mubr.f32.mxu0 0.0
        %347 = vmatmul.mubr.f32.gmra.mrb[0].mxu0 %v242
        %v348 = vpop.f32.mrb[0].mxu0
        %v349 = vadd.f32 %v280, %v348
        %v350 = vpop.f32.mrb[0].mxu0
        %351 = vdwg.mxu0
        %v352 = vmul.f32 %v242, %v242
        %353 = vmatprep.subr.mxu0 0.0
        %354 = vmatpush1.msra.mxu0 %v259
        %355 = vmatprep.subr.mxu0 0.0
        %356 = vmatpush1.msra.mxu0 %v260
        %357 = vmatprep.subr.mxu0 0.0
        %358 = vmatpush1.msra.mxu0 %v261
        %359 = vmatprep.subr.mxu0 0.0
        %360 = vmatpush1.msra.mxu0 %v262
        %361 = vmatprep.subr.mxu0 0.0
        %362 = vmatpush1.msra.mxu0 %v263
        %363 = vmatprep.subr.mxu0 0.0
        %364 = vmatpush1.msra.mxu0 %v264
        %365 = vmatprep.subr.mxu0 0.0
        %366 = vmatpush1.msra.mxu0 %v265
        %367 = vmatprep.subr.mxu0 0.0
        %368 = vmatpush1.msra.mxu0 %v266
        %369 = vmatprep.subr.mxu0 0.0
        %370 = vmatpush1.msra.mxu0 %v267
        %371 = vmatprep.subr.mxu0 0.0
        %372 = vmatpush1.msra.mxu0 %v268
        %373 = vmatprep.subr.mxu0 0.0
        %374 = vmatpush1.msra.mxu0 %v269
        %375 = vmatprep.subr.mxu0 0.0
        %376 = vmatpush1.msra.mxu0 %v270
        %377 = vmatprep.subr.mxu0 0.0
        %378 = vmatpush1.msra.mxu0 %v271
        %379 = vmatprep.subr.mxu0 0.0
        %380 = vmatpush1.msra.mxu0 %v272
        %381 = vmatprep.subr.mxu0 0.0
        %382 = vmatpush1.msra.mxu0 %v273
        %383 = vmatprep.subr.mxu0 0.0
        %384 = vmatpush1.msra.mxu0 %v274
        %385 = vmatprep.subr.mxu0 0.0
        %386 = vmatpush1.msra.mxu0 0.0
        %387 = vmatprep.subr.mxu0 0.0
        %388 = vmatpush1.msra.mxu0 0.0
        %389 = vmatprep.subr.mxu0 0.0
        %390 = vmatpush1.msra.mxu0 0.0
        %391 = vmatprep.subr.mxu0 0.0
        %392 = vmatpush1.msra.mxu0 0.0
        %393 = vmatprep.subr.mxu0 0.0
        %394 = vmatpush1.msra.mxu0 0.0
        %395 = vmatprep.subr.mxu0 0.0
        %396 = vmatpush1.msra.mxu0 0.0
        %397 = vmatprep.subr.mxu0 0.0
        %398 = vmatpush1.msra.mxu0 0.0
        %399 = vmatprep.subr.mxu0 0.0
        %400 = vmatpush1.msra.mxu0 0.0
        %401 = vmatprep.subr.mxu0 0.0
        %402 = vmatpush1.msra.mxu0 0.0
        %403 = vmatprep.subr.mxu0 0.0
        %404 = vmatpush1.msra.mxu0 0.0
        %405 = vmatprep.subr.mxu0 0.0
        %406 = vmatpush1.msra.mxu0 0.0
        %407 = vmatprep.subr.mxu0 0.0
        %408 = vmatpush1.msra.mxu0 0.0
        %409 = vmatprep.subr.mxu0 0.0
        %410 = vmatpush1.msra.mxu0 0.0
        %411 = vmatprep.subr.mxu0 0.0
        %412 = vmatpush1.msra.mxu0 0.0
        %413 = vmatprep.subr.mxu0 0.0
        %414 = vmatpush1.msra.mxu0 0.0
        %415 = vmatprep.subr.mxu0 0.0
        %416 = vmatpush1.msra.mxu0 0.0
        %417 = vmatprep.mubr.f32.mxu0 0.0
        %418 = vmatmul.mubr.f32.gmra.mrb[0].mxu0 %v352
        %v419 = vpop.f32.mrb[0].mxu0
        %v420 = vadd.f32 0.0, %v419
        %v421 = vpop.f32.mrb[0].mxu0
        %422 = vdwg.mxu0
        %v423 = vmul.f32 %v349, %v349
        %424 = vmatprep.subr.mxu0 0.0
        %425 = vmatpush1.msra.mxu0 %v259
        %426 = vmatprep.subr.mxu0 0.0
        %427 = vmatpush1.msra.mxu0 %v260
        %428 = vmatprep.subr.mxu0 0.0
        %429 = vmatpush1.msra.mxu0 %v261
        %430 = vmatprep.subr.mxu0 0.0
        %431 = vmatpush1.msra.mxu0 %v262
        %432 = vmatprep.subr.mxu0 0.0
        %433 = vmatpush1.msra.mxu0 %v263
        %434 = vmatprep.subr.mxu0 0.0
        %435 = vmatpush1.msra.mxu0 %v264
        %436 = vmatprep.subr.mxu0 0.0
        %437 = vmatpush1.msra.mxu0 %v265
        %438 = vmatprep.subr.mxu0 0.0
        %439 = vmatpush1.msra.mxu0 %v266
        %440 = vmatprep.subr.mxu0 0.0
        %441 = vmatpush1.msra.mxu0 %v267
        %442 = vmatprep.subr.mxu0 0.0
        %443 = vmatpush1.msra.mxu0 %v268
        %444 = vmatprep.subr.mxu0 0.0
        %445 = vmatpush1.msra.mxu0 %v269
        %446 = vmatprep.subr.mxu0 0.0
        %447 = vmatpush1.msra.mxu0 %v270
        %448 = vmatprep.subr.mxu0 0.0
        %449 = vmatpush1.msra.mxu0 %v271
        %450 = vmatprep.subr.mxu0 0.0
        %451 = vmatpush1.msra.mxu0 %v272
        %452 = vmatprep.subr.mxu0 0.0
        %453 = vmatpush1.msra.mxu0 %v273
        %454 = vmatprep.subr.mxu0 0.0
        %455 = vmatpush1.msra.mxu0 %v274
        %456 = vmatprep.subr.mxu0 0.0
        %457 = vmatpush1.msra.mxu0 0.0
        %458 = vmatprep.subr.mxu0 0.0
        %459 = vmatpush1.msra.mxu0 0.0
        %460 = vmatprep.subr.mxu0 0.0
        %461 = vmatpush1.msra.mxu0 0.0
        %462 = vmatprep.subr.mxu0 0.0
        %463 = vmatpush1.msra.mxu0 0.0
        %464 = vmatprep.subr.mxu0 0.0
        %465 = vmatpush1.msra.mxu0 0.0
        %466 = vmatprep.subr.mxu0 0.0
        %467 = vmatpush1.msra.mxu0 0.0
        %468 = vmatprep.subr.mxu0 0.0
        %469 = vmatpush1.msra.mxu0 0.0
        %470 = vmatprep.subr.mxu0 0.0
        %471 = vmatpush1.msra.mxu0 0.0
        %472 = vmatprep.subr.mxu0 0.0
        %473 = vmatpush1.msra.mxu0 0.0
        %474 = vmatprep.subr.mxu0 0.0
        %475 = vmatpush1.msra.mxu0 0.0
        %476 = vmatprep.subr.mxu0 0.0
        %477 = vmatpush1.msra.mxu0 0.0
        %478 = vmatprep.subr.mxu0 0.0
        %479 = vmatpush1.msra.mxu0 0.0
        %480 = vmatprep.subr.mxu0 0.0
        %481 = vmatpush1.msra.mxu0 0.0
        %482 = vmatprep.subr.mxu0 0.0
        %483 = vmatpush1.msra.mxu0 0.0
        %484 = vmatprep.subr.mxu0 0.0
        %485 = vmatpush1.msra.mxu0 0.0
        %486 = vmatprep.subr.mxu0 0.0
        %487 = vmatpush1.msra.mxu0 0.0
        %488 = vmatprep.mubr.f32.mxu0 0.0
        %489 = vmatmul.mubr.f32.gmra.mrb[0].mxu0 %v423
        %v490 = vpop.f32.mrb[0].mxu0
        %v491 = vadd.f32 0.0, %v490
        %v492 = vpop.f32.mrb[0].mxu0
        %493 = vdwg.mxu0
        %v494 = vrsqrt.pop %v420
        %v495 = vmul.f32 %v420, %v494
        %vm496 = vcmp.eq.f32.partialorder %v420, inf
        %v497 = vsel %vm496, %v420, %v495
        %vm498 = vcmp.eq.f32.partialorder %v420, 0.0
        %v499 = vand.u32 %v420, 2147483648
        %v500 = vsel %vm498, %v499, %v497
        %v501 = vrsqrt.pop %v491
        %v502 = vmul.f32 %v500, %v501
        %v503 = vmul.f32 %v502, %v349
        %504 = vst [vmem:[%s241] sm:$0xff] %v503
        %s505 = sand.u32 %s119, 1
        %s506 = scalar_lea.sflag [#allocation4], %s505
        %s507 = sand.u32 %s119, 1
        %s508 = smul.addr %s507, 8
        %s509 = scalar_lea.vmem [#allocation8], %s508
        // Predicated region
        $region49: #{tpu_custom_call.1} parent=35 // pred_check
          %p510 = pneg %p129
        $region50: #{tpu_custom_call.1} parent=35 // pred_check_branch
          %512 = sbr.rel (%p510) target = $region52
        $region51: #{tpu_custom_call.1} parent=35 // pred_region
          %s514 = ssub.s32 128, 128
          %515 = vsyncadd %s506, %s514
          %s516 = smul.addr %s22, 128
          %s517 = scalar_lea.hbm %s4, %s516
          %s519 = sshll.u32 %s509, 4
          %s520 = int_to_ptr.vmem [resolvable:$true] %s519
          %522 = dma.vmem_to_hbm [thread:$0]  %s520, 128, %s517, %s506
        $region52: #{tpu_custom_call.1} parent=35 // pred_fallthru
          _
      $region36: #{tpu_custom_call.1} parent=5 // pred_fallthru
        _
      %p523 = scmp.le.s32.totalorder 2, %s17
      // Predicated region
      $region53: #{tpu_custom_call.1} parent=5 // pred_check
        %p524 = pneg %p523
      $region54: #{tpu_custom_call.1} parent=5 // pred_check_branch
        %526 = sbr.rel (%p524) target = $region56
      $region55: #{tpu_custom_call.1} parent=5 // pred_region
        %s527 = ssub.s32 %s17, 2
        // Predicated region
        $region57: #{tpu_custom_call.1} parent=55 // pred_check
          %p528 = pneg %p135
        $region58: #{tpu_custom_call.1} parent=55 // pred_check_branch
          %530 = sbr.rel (%p528) target = $region60
        $region59: #{tpu_custom_call.1} parent=55 // pred_region
          %s531 = sand.u32 %s120, 1
          %s532 = scalar_lea.sflag [#allocation4], %s531
          %s533 = sand.u32 %s120, 1
          %s534 = smul.addr %s533, 8
          %s535 = scalar_lea.vmem [#allocation8], %s534
          %536 = dma.done %s532, 128
        $region60: #{tpu_custom_call.1} parent=55 // pred_fallthru
          _
      $region56: #{tpu_custom_call.1} parent=5 // pred_fallthru
        _
    $region6: #{tpu_custom_call.1} parent=1 // loop_footer
      %s21 = sadd.s32 1, %s17
    $region7: #{tpu_custom_call.1} parent=1 // loop_footer_branch
      %16 = sbr.rel target = $region3
    $region8: #{tpu_custom_call.1} parent=1 // loop_exit
      _
    %537 = vsyncpa [#allocation3], 1
    %s538 = scalar_lea.sflag [#allocation3], 1
    %539 = vsyncpa %s538, 1
    %540 = vsyncpa [#allocation6], 1
    %541 = vsyncpa [#allocation4], 1
    %s542 = scalar_lea.sflag [#allocation4], 1
    %543 = vsyncpa %s542, 1

</llo_original>
